<compile_context>
chip_gen: v7x
topology: tpu7x:2x2x1
jax: 0.10.0
libtpu: 0.0.40
codegen_flags: <defaults>
</compile_context>

<pallas_src>
import jax
import jax.numpy as jnp
from jax.experimental import pallas as pl
from jax.experimental.pallas import tpu as pltpu

_MAX_LANES = 2048            # lane width target (multiple of 128)
_TARGET_BLOCK_BYTES = 2 << 20  # ~2 MiB per block: past HBM-roofline saturation,
                               # 2x-double-buffered in+out fits v5e's 16 MiB default.


def _copy_kernel(x_ref, o_ref):
    # Pure elementwise copy of the current (rows_tile, lanes) block.
    o_ref[...] = x_ref[...]


def _choose_2d_shape(total):
    """Factor `total` into (rows, cols) with cols a large multiple of 128 when possible."""
    for lanes in (2048, 1024, 512, 256, 128):
        if total % lanes == 0:
            return total // lanes, lanes
    # Odd sizes: pick the largest divisor <= _MAX_LANES. The last block dim will
    # equal the full array dim, which is always a legal block shape (may use
    # masked stores, but stays correct and tiled / pipelined).
    for lanes in range(min(total, _MAX_LANES), 0, -1):
        if total % lanes == 0:
            return total // lanes, lanes
    return total, 1  # unreachable (lanes=1 always divides), kept for safety


def _choose_row_tile(rows, cols, itemsize):
    """Rows-per-block: multiple of 8 sublanes, ~_TARGET_BLOCK_BYTES per block."""
    bytes_per_row = max(1, cols * itemsize)
    tr = _TARGET_BLOCK_BYTES // bytes_per_row
    if tr >= rows:
        return rows                      # single block over rows (equals full dim -> legal)
    tr = max(8, (tr // 8) * 8)           # sublane-aligned
    return min(tr, rows)


def _pallas_materialize_flat(flat):
    """Copy a 1-D contiguous buffer through VMEM with a lane-dense tiled kernel."""
    total = flat.shape[0]
    itemsize = jnp.dtype(flat.dtype).itemsize
    rows, cols = _choose_2d_shape(total)
    tr = _choose_row_tile(rows, cols, itemsize)
    grid = (pl.cdiv(rows, tr),)

    x2d = jnp.reshape(flat, (rows, cols))   # metadata-only re-factorization

    out2d = pl.pallas_call(
        _copy_kernel,
        out_shape=jax.ShapeDtypeStruct((rows, cols), flat.dtype),
        grid_spec=pltpu.PrefetchScalarGridSpec(
            num_scalar_prefetch=0,
            grid=grid,
            in_specs=[pl.BlockSpec((tr, cols), lambda i: (i, 0))],
            out_specs=pl.BlockSpec((tr, cols), lambda i: (i, 0)),
        ),
        compiler_params=pltpu.CompilerParams(
            dimension_semantics=("parallel",),
        ),
        cost_estimate=pl.CostEstimate(
            flops=0,
            transcendentals=0,
            bytes_accessed=2 * total * itemsize,
        ),
    )(x2d)

    return jnp.reshape(out2d, (total,))


def flatten(x, keep_batch_dim=True, materialize=False):
    """JAX/Pallas equivalent of Flatten.forward.

    By default this is a metadata-only reshape (matching torch .view(), which
    also moves no data). Set materialize=True to force an explicit HBM copy
    through a tiled Pallas kernel (e.g. as a deliberate fusion boundary).
    """
    if keep_batch_dim:
        target_shape = (x.shape[0], -1)
    else:
        target_shape = (-1,)

    if not materialize:
        return jnp.reshape(x, target_shape)   # metadata-only, zero HBM traffic

    flat = jnp.reshape(x, (-1,))              # metadata-only glue
    flat_out = _pallas_materialize_flat(flat)  # Pallas copy (hot path)
    return jnp.reshape(flat_out, target_shape)


if __name__ == "__main__":
    key = jax.random.PRNGKey(0)
    # Small NCHW input consistent with a conv-net feature map.
    x = jax.random.normal(key, (2, 4, 16, 16), dtype=jnp.float32)

    # Default (metadata-only) path, keep_batch_dim=True.
    y0 = jax.block_until_ready(flatten(x, keep_batch_dim=True))
    assert y0.shape == (2, 4 * 16 * 16)
    assert jnp.allclose(y0, jnp.reshape(x, (2, -1)))

    # Materializing Pallas-copy path, keep_batch_dim=True.
    y1 = jax.block_until_ready(flatten(x, keep_batch_dim=True, materialize=True))
    assert y1.shape == (2, 4 * 16 * 16)
    assert jnp.allclose(y1, jnp.reshape(x, (2, -1)))

    # Materializing Pallas-copy path, keep_batch_dim=False.
    z = jax.block_until_ready(flatten(x, keep_batch_dim=False, materialize=True))
    assert z.shape == (2 * 4 * 16 * 16,)
    assert jnp.allclose(z, jnp.reshape(x, (-1,)))

    print("KERNEL_OK")
</pallas_src>

<mosaic_0001>
module attributes {stable_mosaic.version = 11 : i64} {
  func.func @_copy_kernel(%arg0: i32, %arg1: memref<1x2048xf32, #tpu.memory_space<vmem>>, %arg2: memref<1x2048xf32, #tpu.memory_space<vmem>>) attributes {dimension_semantics = [#tpu.dimension_semantics<parallel>], iteration_bounds = array<i64: 1>, scalar_prefetch = 0 : i64, scratch_operands = 0 : i64, tpu.core_type = #tpu.core_type<tc>, window_params = [{transform_indices = @transform_0, window_bounds = array<i64: 1, 2048>}, {transform_indices = @transform_1, window_bounds = array<i64: 1, 2048>}]} {
    %c0 = arith.constant 0 : index
    %c0_0 = arith.constant 0 : index
    %0 = vector.load %arg1[%c0, %c0_0] : memref<1x2048xf32, #tpu.memory_space<vmem>>, vector<1x2048xf32>
    %c0_1 = arith.constant 0 : index
    %c0_2 = arith.constant 0 : index
    %1 = vector.load %arg2[%c0_1, %c0_2] : memref<1x2048xf32, #tpu.memory_space<vmem>>, vector<1x2048xf32>
    tpu.vector_store %arg2[%c0_1, %c0_2], %0 {strides = array<i32>} : memref<1x2048xf32, #tpu.memory_space<vmem>>, vector<1x2048xf32>,
    return
  }
  func.func @transform_0(%arg0: i32) -> (i32, i32) {
    %c0_i32 = arith.constant 0 : i32
    %c0_i32_0 = arith.constant 0 : i32
    return %arg0, %c0_i32 : i32, i32
  }
  func.func @transform_1(%arg0: i32) -> (i32, i32) {
    %c0_i32 = arith.constant 0 : i32
    %c0_i32_0 = arith.constant 0 : i32
    return %arg0, %c0_i32 : i32, i32
  }
}

</mosaic_0001>

<llo_original>
// kernel: tpu_custom_call.1
$region0: #{tpu_custom_call.1}
  #allocation0 [shape = 'u32[]', space=smem, size = 0x4, offset = 0x4, fixed_abs, tag = 'smem constant byte address 0x4 - core index']
  #allocation1 [shape = 'u32[144,128]{1,0:T(1,128)}', space=vmem, size = 0x12000, scoped, tag = 'internal scratch']
  %s0 = inlined_call_operand.hbm [shape: f32[1,2048], index: 0, kind: input, shape index: {}]
  %s1 = inlined_call_operand.hbm [shape: f32[1,2048], index: 1, kind: output, shape index: {}]
  %s2 = sld [smem:[#allocation0]]
  $region18: #{tpu_custom_call.1} parent=0
    _
  %s4 = ssub.s32 1, %s2
  %s5 = scalar_select 0, %s4, %s2
  $region1: #{tpu_custom_call.1} parent=0
    #allocation2 [shape = 'u8[8192]{0}', space=vmem, size = 0x2000, scoped, tag = 'input window, operand 0, single buffered']
    #allocation3 [shape = 's32[1]{0}', space=sflag, size = 0x4, scoped, tag = 'scoped memory for tpu_custom_call.1']
    #allocation4 [shape = 's32[1]{0}', space=sflag, size = 0x4, scoped, tag = 'scoped memory for tpu_custom_call.1']
    #allocation5 [shape = 'u8[8192]{0}', space=vmem, size = 0x2000, scoped, tag = 'output window, operand 0, single buffered']
    %6 = vsyncpa [#allocation3], 0
    %7 = vsyncpa [#allocation4], 0
    // Predicated region
    $region2: #{tpu_custom_call.1} parent=1 // pred_check
      _
    $region3: #{tpu_custom_call.1} parent=1 // pred_check_branch
      %9 = sbr.rel (0) target = $region5
    $region4: #{tpu_custom_call.1} parent=1 // pred_region
      %s11 = ssub.s32 256, 256
      %12 = vsyncadd [#allocation3], %s11
      %s14 = sshll.u32 [#allocation2], 4
      %s15 = int_to_ptr.vmem [resolvable:$true] %s14
      %17 = dma.hbm_to_vmem [thread:$0]  %s0, 256, %s15, [#allocation3]
    $region5: #{tpu_custom_call.1} parent=1 // pred_fallthru
      _
    // Predicated region
    $region6: #{tpu_custom_call.1} parent=1 // pred_check
      _
    $region7: #{tpu_custom_call.1} parent=1 // pred_check_branch
      %19 = sbr.rel (0) target = $region9
    $region8: #{tpu_custom_call.1} parent=1 // pred_region
      %20 = dma.done [#allocation3], 256
    $region9: #{tpu_custom_call.1} parent=1 // pred_fallthru
      _
    %v21 = vld [vmem:[#allocation2] sm:$0xff]
    %v22 = vld [vmem:[#allocation2 + $0x8] sm:$0xff]
    %23 = vst [vmem:[#allocation5] sm:$0xff] %v21
    %24 = vst [vmem:[#allocation5 + $0x8] sm:$0xff] %v22
    // Predicated region
    $region10: #{tpu_custom_call.1} parent=1 // pred_check
      _
    $region11: #{tpu_custom_call.1} parent=1 // pred_check_branch
      %26 = sbr.rel (0) target = $region13
    $region12: #{tpu_custom_call.1} parent=1 // pred_region
      %s28 = ssub.s32 256, 256
      %29 = vsyncadd [#allocation4], %s28
      %s31 = sshll.u32 [#allocation5], 4
      %s32 = int_to_ptr.vmem [resolvable:$true] %s31
      %34 = dma.vmem_to_hbm [thread:$0]  %s32, 256, %s1, [#allocation4]
    $region13: #{tpu_custom_call.1} parent=1 // pred_fallthru
      _
    // Predicated region
    $region14: #{tpu_custom_call.1} parent=1 // pred_check
      _
    $region15: #{tpu_custom_call.1} parent=1 // pred_check_branch
      %36 = sbr.rel (0) target = $region17
    $region16: #{tpu_custom_call.1} parent=1 // pred_region
      %37 = dma.done [#allocation4], 256
    $region17: #{tpu_custom_call.1} parent=1 // pred_fallthru
      _
    %38 = vsyncpa [#allocation3], 1
    %39 = vsyncpa [#allocation4], 1

</llo_original>
